<compile_context>
chip_gen: v6e
topology: v6e:2x2x1
jax: 0.10.0
libtpu: 0.0.40
codegen_flags: <defaults>
</compile_context>

<pallas_src>
import jax
import jax.numpy as jnp
from jax.experimental import pallas as pl
from jax.experimental.pallas import tpu as pltpu

LN_EPS = 1e-5        # nn.LayerNorm default
MISH_CAP = 20.0      # above this tanh(softplus(h)) == 1.0 in f32


def _mish(h):
    # tanh(softplus(h)) = u/(u+2), u = t*(t+2), t = exp(min(h, cap)).
    # One EUP exp + one EUP approx reciprocal; VALU does the rest.
    t = jnp.exp(jnp.minimum(h, MISH_CAP))
    u = t * (t + 2.0)
    return h * (u * pl.reciprocal(u + 2.0, approx=True))


# ---------------------------------------------------------------------------
# Path A: full weights resident in VMEM, 1-D grid over batch tiles.
# ---------------------------------------------------------------------------
def _resident_kernel(x_ref, g_ref, bt_ref, w1_ref, b1_ref, w2_ref, b2_ref,
                     o_ref):
    # x: (tb, H)  g/bt/b2: (1, H)  w1: (H, 4H)  b1: (1, 4H)  w2: (4H, H)
    x = x_ref[...].astype(jnp.float32)
    mean = jnp.mean(x, axis=-1, keepdims=True)
    centered = x - mean
    var = jnp.mean(centered * centered, axis=-1, keepdims=True)
    xn = centered * jax.lax.rsqrt(var + LN_EPS) * g_ref[...] + bt_ref[...]

    h = jnp.dot(xn.astype(w1_ref.dtype), w1_ref[...],
                preferred_element_type=jnp.float32) + b1_ref[...]
    h = _mish(h)
    y = jnp.dot(h.astype(w2_ref.dtype), w2_ref[...],
                preferred_element_type=jnp.float32)
    # Residual add + b2 (dropout is identity in eval mode).
    o_ref[...] = (x + y + b2_ref[...]).astype(o_ref.dtype)


# ---------------------------------------------------------------------------
# Path B: stream w1/w2 in chunks of the 4H dim, 2-D grid (batch, 4H chunks).
# ---------------------------------------------------------------------------
def _chunked_kernel(x_ref, g_ref, bt_ref, w1_ref, b1_ref, w2_ref, b2_ref,
                    o_ref, xn_ref, acc_ref):
    # x: (tb, H)  w1: (H, t4h)  b1: (1, t4h)  w2: (t4h, H)
    # xn_ref: (tb, H) scratch (matmul dtype)   acc_ref: (tb, H) f32 scratch
    j = pl.program_id(1)

    @pl.when(j == 0)
    def _():
        x = x_ref[...].astype(jnp.float32)
        mean = jnp.mean(x, axis=-1, keepdims=True)
        centered = x - mean
        var = jnp.mean(centered * centered, axis=-1, keepdims=True)
        xn = centered * jax.lax.rsqrt(var + LN_EPS) * g_ref[...] + bt_ref[...]
        xn_ref[...] = xn.astype(xn_ref.dtype)
        # Fold residual + b2 into the accumulator -> finalize is a pure store.
        acc_ref[...] = x + b2_ref[...]

    h = jnp.dot(xn_ref[...], w1_ref[...], preferred_element_type=jnp.float32)
    h = _mish(h + b1_ref[...])
    acc_ref[...] += jnp.dot(h.astype(w2_ref.dtype), w2_ref[...],
                            preferred_element_type=jnp.float32)

    @pl.when(j == pl.num_programs(1) - 1)
    def _():
        o_ref[...] = acc_ref[...].astype(o_ref.dtype)


# ---------------------------------------------------------------------------
# Param prep (one-time, outside the hot path).
# ---------------------------------------------------------------------------
def prepare_params(gamma, beta, w1, b1, w2, b2, matmul_dtype=jnp.bfloat16):
    """PyTorch convention in: w1 (4H, H), w2 (H, 4H). Weights are transposed to
    (in, out) and cast to `matmul_dtype`; LN params and biases stay f32."""
    H = gamma.shape[0]
    H4 = 4 * H
    g2 = jnp.asarray(gamma, jnp.float32).reshape(1, H)
    be2 = jnp.asarray(beta, jnp.float32).reshape(1, H)
    w1_t = jnp.asarray(w1).T.astype(matmul_dtype)       # (H, 4H)
    b1_2 = jnp.asarray(b1, jnp.float32).reshape(1, H4)
    w2_t = jnp.asarray(w2).T.astype(matmul_dtype)       # (4H, H)
    b2_2 = jnp.asarray(b2, jnp.float32).reshape(1, H)
    return (g2, be2, w1_t, b1_2, w2_t, b2_2)


# ---------------------------------------------------------------------------
# Generation-aware VMEM budget + tile selection.
# ---------------------------------------------------------------------------
def _vmem_capacity_bytes():
    try:
        return int(pltpu.get_tpu_info().vmem_capacity_bytes)
    except Exception:
        return 64 * 1024 * 1024   # conservative: assume v7x-sized VMEM


def _batch_tile_candidates(B):
    cands = [d for d in range(B, 0, -1) if B % d == 0 and (d % 8 == 0 or d == B)]
    # Preference: >= 2 tiles (v7x megacore sharding), multiple of 128
    # (full MXU rows / roofline), then largest.
    cands.sort(key=lambda d: (B // d >= 2, d % 128 == 0, d), reverse=True)
    return cands


def _h4_chunk_candidates(H4):
    pref = [1024, 512, 2048, 256, 128]
    return [c for c in pref if c <= H4 and H4 % c == 0]


def _select_config(B, H, H4, x_dtype, out_dtype, mm_dtype, budget):
    """Returns (block_b, block_h4, resident)."""
    mi = jnp.dtype(mm_dtype).itemsize
    xi = jnp.dtype(x_dtype).itemsize
    oi = jnp.dtype(out_dtype).itemsize

    def resident_bytes(bb):
        w = 2 * (H * H4 + H4 * H) * mi                  # w1 + w2 (2 buffers)
        xio = 2 * bb * H * (xi + oi)                    # x / out, double-buffered
        vec = 2 * (H4 + 3 * H) * 4                      # b1, gamma, beta, b2
        inter = 3 * bb * H4 * 4 + 2 * bb * H * 4        # Mish temps + x/xn f32
        return w + xio + vec + inter

    def chunked_bytes(bb, bh4):
        w = 2 * (H * bh4 + bh4 * H) * mi                # w1/w2 chunks, dbl-buffered
        xio = 2 * bb * H * (xi + oi)
        vec = 2 * (bh4 + 3 * H) * 4
        scratch = bb * H * (mi + 4)                     # xn cache + f32 accumulator
        inter = 3 * bb * bh4 * 4                        # live Mish temporaries
        return w + xio + vec + scratch + inter

    bcands = _batch_tile_candidates(B)
    hcands = _h4_chunk_candidates(H4)

    # Path A: keep the full weights VMEM-resident (grid-invariant BlockSpecs).
    for bb in bcands:
        if resident_bytes(bb) <= budget:
            return bb, H4, True
    # Path B: chunk the 4H dim; spend the budget on block_b first (roofline),
    # keep block_h4 moderate.
    for bb in bcands:
        for bh4 in hcands:
            if chunked_bytes(bb, bh4) <= budget:
                return bb, bh4, False
    # Nothing fits the estimate: smallest config, let the compiler try.
    return bcands[-1], hcands[-1], False


# ---------------------------------------------------------------------------
# Wrapper.
# ---------------------------------------------------------------------------
def mlp_resnet_block(x, params, *, block_b=None, block_h4=None):
    """x: (B, H). `params` from prepare_params()."""
    g2, be2, w1_t, b1_2, w2_t, b2_2 = params
    B, H = x.shape
    H4 = w1_t.shape[1]
    assert w1_t.shape == (H, H4) and w2_t.shape == (H4, H)
    assert H % 128 == 0, (
        f"hidden_dim must be a multiple of 128 for lane-dense stores / full "
        f"MXU tiles (got {H}); pad the feature dim upstream.")

    mm_dtype = w1_t.dtype
    cap = _vmem_capacity_bytes()
    # ~48 MiB requested on v7x (64 MiB physical), ~100 MiB on v5e/v6e (128 MiB).
    vmem_limit = int(max(min(cap - 16 * 1024 * 1024, int(0.8 * cap)),
                         32 * 1024 * 1024))
    budget = vmem_limit - 8 * 1024 * 1024     # headroom for estimate error

    auto_bb, auto_bh4, resident = _select_config(
        B, H, H4, x.dtype, x.dtype, mm_dtype, budget)
    if block_b is None:
        block_b = auto_bb
    if block_h4 is None:
        block_h4 = auto_bh4
    else:
        resident = block_h4 >= H4
    assert B % block_b == 0 and (block_b == B or block_b % 8 == 0), block_b
    assert H4 % block_h4 == 0 and block_h4 % 128 == 0, block_h4

    if resident:
        grid = (B // block_b,)
        return pl.pallas_call(
            _resident_kernel,
            out_shape=jax.ShapeDtypeStruct((B, H), x.dtype),
            grid_spec=pltpu.PrefetchScalarGridSpec(
                num_scalar_prefetch=0,
                grid=grid,
                in_specs=[
                    pl.BlockSpec((block_b, H), lambda i: (i, 0)),   # x tile
                    pl.BlockSpec((1, H), lambda i: (0, 0)),          # gamma
                    pl.BlockSpec((1, H), lambda i: (0, 0)),          # beta
                    pl.BlockSpec((H, H4), lambda i: (0, 0)),         # w1^T (resident)
                    pl.BlockSpec((1, H4), lambda i: (0, 0)),         # b1
                    pl.BlockSpec((H4, H), lambda i: (0, 0)),         # w2^T (resident)
                    pl.BlockSpec((1, H), lambda i: (0, 0)),          # b2
                ],
                out_specs=pl.BlockSpec((block_b, H), lambda i: (i, 0)),
            ),
            compiler_params=pltpu.CompilerParams(
                dimension_semantics=("parallel",),
                vmem_limit_bytes=vmem_limit,
            ),
        )(x, g2, be2, w1_t, b1_2, w2_t, b2_2)

    grid = (B // block_b, H4 // block_h4)
    return pl.pallas_call(
        _chunked_kernel,
        out_shape=jax.ShapeDtypeStruct((B, H), x.dtype),
        grid_spec=pltpu.PrefetchScalarGridSpec(
            num_scalar_prefetch=0,
            grid=grid,
            in_specs=[
                pl.BlockSpec((block_b, H), lambda i, j: (i, 0)),    # x tile
                pl.BlockSpec((1, H), lambda i, j: (0, 0)),           # gamma
                pl.BlockSpec((1, H), lambda i, j: (0, 0)),           # beta
                pl.BlockSpec((H, block_h4), lambda i, j: (0, j)),    # w1^T chunk
                pl.BlockSpec((1, block_h4), lambda i, j: (0, j)),    # b1 chunk
                pl.BlockSpec((block_h4, H), lambda i, j: (j, 0)),    # w2^T chunk
                pl.BlockSpec((1, H), lambda i, j: (0, 0)),           # b2
            ],
            out_specs=pl.BlockSpec((block_b, H), lambda i, j: (i, 0)),
            scratch_shapes=[
                pltpu.VMEM((block_b, H), mm_dtype),      # cached LayerNorm out
                pltpu.VMEM((block_b, H), jnp.float32),   # residual+b2 accumulator
            ],
        ),
        compiler_params=pltpu.CompilerParams(
            dimension_semantics=("parallel", "arbitrary"),
            vmem_limit_bytes=vmem_limit,
        ),
    )(x, g2, be2, w1_t, b1_2, w2_t, b2_2)


# ---------------------------------------------------------------------------
# Pure-JAX reference (matches the PyTorch module in eval mode).
# ---------------------------------------------------------------------------
def reference(x, gamma, beta, w1, b1, w2, b2):
    xf = x.astype(jnp.float32)
    mean = jnp.mean(xf, axis=-1, keepdims=True)
    var = jnp.mean((xf - mean) ** 2, axis=-1, keepdims=True)
    xn = (xf - mean) * jax.lax.rsqrt(var + LN_EPS) * gamma + beta
    hp = jax.lax.Precision.HIGHEST
    h = jnp.dot(xn, w1.T, precision=hp) + b1
    h = h * jnp.tanh(jax.nn.softplus(h))
    y = jnp.dot(h, w2.T, precision=hp) + b2
    return (xf + y).astype(x.dtype)


if __name__ == "__main__":
    B, H = 64, 128     # lane-dense H (multiple of 128)
    key = jax.random.PRNGKey(0)
    kx, kg, kb, kw1, kb1, kw2, kb2 = jax.random.split(key, 7)

    x = jax.random.normal(kx, (B, H), dtype=jnp.float32)
    gamma = 1.0 + 0.1 * jax.random.normal(kg, (H,), dtype=jnp.float32)
    beta = 0.1 * jax.random.normal(kb, (H,), dtype=jnp.float32)
    w1 = jax.random.normal(kw1, (4 * H, H), dtype=jnp.float32) / jnp.sqrt(H)
    b1 = 0.01 * jax.random.normal(kb1, (4 * H,), dtype=jnp.float32)
    w2 = jax.random.normal(kw2, (H, 4 * H), dtype=jnp.float32) / jnp.sqrt(4 * H)
    b2 = 0.01 * jax.random.normal(kb2, (H,), dtype=jnp.float32)

    ref = reference(x, gamma, beta, w1, b1, w2, b2)

    # 1) f32-matmul, auto config -> weights-resident 1-D-grid fast path.
    p_f32 = prepare_params(gamma, beta, w1, b1, w2, b2, matmul_dtype=jnp.float32)
    out_res = jax.block_until_ready(mlp_resnet_block(x, p_f32))
    assert out_res.shape == (B, H)
    err = float(jnp.max(jnp.abs(out_res - ref)))
    assert jnp.allclose(out_res, ref, atol=5e-3, rtol=5e-3), err

    # 2) f32-matmul, forced chunked path (2-D grid: 4 batch tiles x 2 chunks,
    #    exercises the accumulator / pl.when init+finalize path).
    out_chk = jax.block_until_ready(
        mlp_resnet_block(x, p_f32, block_b=16, block_h4=256))
    assert out_chk.shape == (B, H)
    err = float(jnp.max(jnp.abs(out_chk - ref)))
    assert jnp.allclose(out_chk, ref, atol=5e-3, rtol=5e-3), err

    # 3) bf16 production path, auto config (weights-resident here).
    p_bf16 = prepare_params(gamma, beta, w1, b1, w2, b2, matmul_dtype=jnp.bfloat16)
    out_bf = jax.block_until_ready(mlp_resnet_block(x, p_bf16))
    assert out_bf.shape == (B, H)
    err_bf = float(jnp.max(jnp.abs(out_bf - ref)))
    assert jnp.allclose(out_bf, ref, atol=6e-2, rtol=6e-2), err_bf

    print("KERNEL_OK")
</pallas_src>

<mosaic_0001>
module attributes {stable_mosaic.version = 11 : i64} {
  func.func @_resident_kernel(%arg0: i32, %arg1: memref<32x128xf32, #tpu.memory_space<vmem>>, %arg2: memref<1x128xf32, #tpu.memory_space<vmem>>, %arg3: memref<1x128xf32, #tpu.memory_space<vmem>>, %arg4: memref<128x512xf32, #tpu.memory_space<vmem>>, %arg5: memref<1x512xf32, #tpu.memory_space<vmem>>, %arg6: memref<512x128xf32, #tpu.memory_space<vmem>>, %arg7: memref<1x128xf32, #tpu.memory_space<vmem>>, %arg8: memref<32x128xf32, #tpu.memory_space<vmem>>) attributes {dimension_semantics = [#tpu.dimension_semantics<parallel>], iteration_bounds = array<i64: 2>, scalar_prefetch = 0 : i64, scratch_operands = 0 : i64, tpu.core_type = #tpu.core_type<tc>, window_params = [{transform_indices = @transform_0, window_bounds = array<i64: 32, 128>}, {pipeline_mode = #tpu.pipeline_mode<synchronous>, transform_indices = @transform_1, window_bounds = array<i64: 1, 128>}, {pipeline_mode = #tpu.pipeline_mode<synchronous>, transform_indices = @transform_2, window_bounds = array<i64: 1, 128>}, {pipeline_mode = #tpu.pipeline_mode<synchronous>, transform_indices = @transform_3, window_bounds = array<i64: 128, 512>}, {pipeline_mode = #tpu.pipeline_mode<synchronous>, transform_indices = @transform_4, window_bounds = array<i64: 1, 512>}, {pipeline_mode = #tpu.pipeline_mode<synchronous>, transform_indices = @transform_5, window_bounds = array<i64: 512, 128>}, {pipeline_mode = #tpu.pipeline_mode<synchronous>, transform_indices = @transform_6, window_bounds = array<i64: 1, 128>}, {transform_indices = @transform_7, window_bounds = array<i64: 32, 128>}]} {
    %c0 = arith.constant 0 : index
    %c0_0 = arith.constant 0 : index
    %0 = vector.load %arg1[%c0, %c0_0] : memref<32x128xf32, #tpu.memory_space<vmem>>, vector<32x128xf32>
    %cst = arith.constant dense<0.000000e+00> : vector<32xf32>
    %1 = vector.multi_reduction <add>, %0, %cst [1] : vector<32x128xf32> to vector<32xf32>
    %2 = vector.shape_cast %1 : vector<32xf32> to vector<32x1xf32>
    %cst_1 = arith.constant 1.280000e+02 : f32
    %3 = vector.broadcast %cst_1 : f32 to vector<32x1xf32>
    %4 = arith.divf %2, %3 : vector<32x1xf32>
    %5 = vector.broadcast %4 : vector<32x1xf32> to vector<32x128xf32>
    %6 = arith.subf %0, %5 : vector<32x128xf32>
    %7 = arith.mulf %6, %6 : vector<32x128xf32>
    %cst_2 = arith.constant dense<0.000000e+00> : vector<32xf32>
    %8 = vector.multi_reduction <add>, %7, %cst_2 [1] : vector<32x128xf32> to vector<32xf32>
    %9 = vector.shape_cast %8 : vector<32xf32> to vector<32x1xf32>
    %cst_3 = arith.constant 1.280000e+02 : f32
    %10 = vector.broadcast %cst_3 : f32 to vector<32x1xf32>
    %11 = arith.divf %9, %10 : vector<32x1xf32>
    %cst_4 = arith.constant 9.99999974E-6 : f32
    %12 = vector.broadcast %cst_4 : f32 to vector<32x1xf32>
    %13 = arith.addf %11, %12 : vector<32x1xf32>
    %14 = math.rsqrt %13 : vector<32x1xf32>
    %15 = vector.broadcast %14 : vector<32x1xf32> to vector<32x128xf32>
    %16 = arith.mulf %6, %15 : vector<32x128xf32>
    %c0_5 = arith.constant 0 : index
    %c0_6 = arith.constant 0 : index
    %17 = vector.load %arg2[%c0_5, %c0_6] : memref<1x128xf32, #tpu.memory_space<vmem>>, vector<1x128xf32>
    %18 = vector.broadcast %17 : vector<1x128xf32> to vector<32x128xf32>
    %19 = arith.mulf %16, %18 : vector<32x128xf32>
    %c0_7 = arith.constant 0 : index
    %c0_8 = arith.constant 0 : index
    %20 = vector.load %arg3[%c0_7, %c0_8] : memref<1x128xf32, #tpu.memory_space<vmem>>, vector<1x128xf32>
    %21 = vector.broadcast %20 : vector<1x128xf32> to vector<32x128xf32>
    %22 = arith.addf %19, %21 : vector<32x128xf32>
    %c0_9 = arith.constant 0 : index
    %c0_10 = arith.constant 0 : index
    %23 = vector.load %arg4[%c0_9, %c0_10] : memref<128x512xf32, #tpu.memory_space<vmem>>, vector<128x512xf32>
    %cst_11 = arith.constant dense<0.000000e+00> : vector<32x512xf32>
    %24 = tpu.matmul %22, %23, %cst_11 {dimension_numbers = #tpu.dot_dimension_numbers<[1], [0], [0], [1], [0, 0, 1, 1], [], []>} : vector<32x128xf32>, vector<128x512xf32>, vector<32x512xf32> -> vector<32x512xf32>
    %c0_12 = arith.constant 0 : index
    %c0_13 = arith.constant 0 : index
    %25 = vector.load %arg5[%c0_12, %c0_13] : memref<1x512xf32, #tpu.memory_space<vmem>>, vector<1x512xf32>
    %26 = vector.broadcast %25 : vector<1x512xf32> to vector<32x512xf32>
    %27 = arith.addf %24, %26 : vector<32x512xf32>
    %cst_14 = arith.constant 2.000000e+01 : f32
    %28 = vector.broadcast %cst_14 : f32 to vector<32x512xf32>
    %29 = arith.minimumf %27, %28 : vector<32x512xf32>
    %30 = math.exp %29 : vector<32x512xf32>
    %cst_15 = arith.constant 2.000000e+00 : f32
    %31 = vector.broadcast %cst_15 : f32 to vector<32x512xf32>
    %32 = arith.addf %30, %31 : vector<32x512xf32>
    %33 = arith.mulf %30, %32 : vector<32x512xf32>
    %cst_16 = arith.constant 2.000000e+00 : f32
    %34 = vector.broadcast %cst_16 : f32 to vector<32x512xf32>
    %35 = arith.addf %33, %34 : vector<32x512xf32>
    %36 = tpu.reciprocal %35 {approx = true} : vector<32x512xf32> -> vector<32x512xf32>
    %37 = arith.mulf %33, %36 : vector<32x512xf32>
    %38 = arith.mulf %27, %37 : vector<32x512xf32>
    %c0_17 = arith.constant 0 : index
    %c0_18 = arith.constant 0 : index
    %39 = vector.load %arg6[%c0_17, %c0_18] : memref<512x128xf32, #tpu.memory_space<vmem>>, vector<512x128xf32>
    %cst_19 = arith.constant dense<0.000000e+00> : vector<32x128xf32>
    %40 = tpu.matmul %38, %39, %cst_19 {dimension_numbers = #tpu.dot_dimension_numbers<[1], [0], [0], [1], [0, 0, 1, 1], [], []>} : vector<32x512xf32>, vector<512x128xf32>, vector<32x128xf32> -> vector<32x128xf32>
    %41 = arith.addf %0, %40 : vector<32x128xf32>
    %c0_20 = arith.constant 0 : index
    %c0_21 = arith.constant 0 : index
    %42 = vector.load %arg7[%c0_20, %c0_21] : memref<1x128xf32, #tpu.memory_space<vmem>>, vector<1x128xf32>
    %43 = vector.broadcast %42 : vector<1x128xf32> to vector<32x128xf32>
    %44 = arith.addf %41, %43 : vector<32x128xf32>
    %c0_22 = arith.constant 0 : index
    %c0_23 = arith.constant 0 : index
    %45 = vector.load %arg8[%c0_22, %c0_23] : memref<32x128xf32, #tpu.memory_space<vmem>>, vector<32x128xf32>
    tpu.vector_store %arg8[%c0_22, %c0_23], %44 {strides = array<i32>} : memref<32x128xf32, #tpu.memory_space<vmem>>, vector<32x128xf32>,
    return
  }
  func.func @transform_0(%arg0: i32) -> (i32, i32) {
    %c0_i32 = arith.constant 0 : i32
    %c0_i32_0 = arith.constant 0 : i32
    return %arg0, %c0_i32 : i32, i32
  }
  func.func @transform_1(%arg0: i32) -> (i32, i32) {
    %c0_i32 = arith.constant 0 : i32
    %c0_i32_0 = arith.constant 0 : i32
    %c0_i32_1 = arith.constant 0 : i32
    return %c0_i32, %c0_i32_0 : i32, i32
  }
  func.func @transform_2(%arg0: i32) -> (i32, i32) {
    %c0_i32 = arith.constant 0 : i32
    %c0_i32_0 = arith.constant 0 : i32
    %c0_i32_1 = arith.constant 0 : i32
    return %c0_i32, %c0_i32_0 : i32, i32
  }
  func.func @transform_3(%arg0: i32) -> (i32, i32) {
    %c0_i32 = arith.constant 0 : i32
    %c0_i32_0 = arith.constant 0 : i32
    %c0_i32_1 = arith.constant 0 : i32
    return %c0_i32, %c0_i32_0 : i32, i32
  }
  func.func @transform_4(%arg0: i32) -> (i32, i32) {
    %c0_i32 = arith.constant 0 : i32
    %c0_i32_0 = arith.constant 0 : i32
    %c0_i32_1 = arith.constant 0 : i32
    return %c0_i32, %c0_i32_0 : i32, i32
  }
  func.func @transform_5(%arg0: i32) -> (i32, i32) {
    %c0_i32 = arith.constant 0 : i32
    %c0_i32_0 = arith.constant 0 : i32
    %c0_i32_1 = arith.constant 0 : i32
    return %c0_i32, %c0_i32_0 : i32, i32
  }
  func.func @transform_6(%arg0: i32) -> (i32, i32) {
    %c0_i32 = arith.constant 0 : i32
    %c0_i32_0 = arith.constant 0 : i32
    %c0_i32_1 = arith.constant 0 : i32
    return %c0_i32, %c0_i32_0 : i32, i32
  }
  func.func @transform_7(%arg0: i32) -> (i32, i32) {
    %c0_i32 = arith.constant 0 : i32
    %c0_i32_0 = arith.constant 0 : i32
    return %arg0, %c0_i32 : i32, i32
  }
}

</mosaic_0001>

<llo_original>
// kernel: tpu_custom_call.1
$region0: #{tpu_custom_call.1}
  #allocation0 [shape = 'u32[]', space=smem, size = 0x4, offset = 0x4, fixed_abs, tag = 'smem constant byte address 0x4 - core index']
  #allocation1 [shape = 'u32[144,128]{1,0:T(1,128)}', space=vmem, size = 0x12000, scoped, tag = 'internal scratch']
  %s0 = inlined_call_operand.hbm [shape: f32[64,128], index: 0, kind: input, shape index: {}]
  %s1 = inlined_call_operand.vmem [shape: f32[1,128], index: 1, kind: input, shape index: {}]
  %s2 = inlined_call_operand.vmem [shape: f32[1,128], index: 2, kind: input, shape index: {}]
  %s3 = inlined_call_operand.hbm [shape: f32[128,512], index: 3, kind: input, shape index: {}]
  %s4 = inlined_call_operand.vmem [shape: f32[1,512], index: 4, kind: input, shape index: {}]
  %s5 = inlined_call_operand.hbm [shape: f32[512,128], index: 5, kind: input, shape index: {}]
  %s6 = inlined_call_operand.vmem [shape: f32[1,128], index: 6, kind: input, shape index: {}]
  %s7 = inlined_call_operand.hbm [shape: f32[64,128], index: 7, kind: output, shape index: {}]
  %s8 = sld [smem:[#allocation0]]
  $region73: #{tpu_custom_call.1} parent=0
    _
  %s10 = ssub.s32 1, %s8
  %s11 = scalar_select 0, %s10, %s8
  $region1: #{tpu_custom_call.1} parent=0
    #allocation2 [shape = 'u8[32768]{0}', space=vmem, size = 0x8000, scoped, tag = 'input window, operand 0']
    #allocation3 [shape = 's32[2]{0}', space=sflag, size = 0x8, scoped, tag = 'scoped memory for tpu_custom_call.1']
    #allocation4 [shape = 's32[2]{0}', space=sflag, size = 0x8, scoped, tag = 'scoped memory for tpu_custom_call.1']
    #allocation5 [shape = 'u8[262144]{0}', space=vmem, size = 0x40000, scoped, tag = 'input window, operand 3, single buffered']
    #allocation6 [shape = 's32[1]{0}', space=sflag, size = 0x4, scoped, tag = 'scoped memory for tpu_custom_call.1']
    #allocation7 [shape = 'u8[262144]{0}', space=vmem, size = 0x40000, scoped, tag = 'input window, operand 5, single buffered']
    #allocation8 [shape = 'u8[32768]{0}', space=vmem, size = 0x8000, scoped, tag = 'output window, operand 0']
    %12 = vsyncpa [#allocation3], 0
    %s13 = scalar_lea.sflag [#allocation3], 1
    %14 = vsyncpa %s13, 0
    %15 = vsyncpa [#allocation6], 0
    %16 = vsyncpa [#allocation4], 0
    %s17 = scalar_lea.sflag [#allocation4], 1
    %18 = vsyncpa %s17, 0
    loop: start=0, step=1, limit=4
    $region2: #{tpu_custom_call.1} parent=1 // loop_pre_header
      _
    $region3: #{tpu_custom_call.1} parent=1 // loop_header
      %s20 = sphi 0, %s24
      %p21 = scmp.ge.s32.totalorder %s20, 4
      %s30 = sphi 0, %s32
      %s33 = sphi 0, %s30
      %s34 = sphi 0, %s33
      %s50 = sphi 0, %s34
      %s54 = sphi 0, %s54
      %s56 = sphi 0, %s54
      %s57 = sphi 0, %s56
      %s71 = sphi 0, %s57
      %s75 = sphi 0, %s75
      %s77 = sphi 0, %s75
      %s78 = sphi 0, %s77
      %s92 = sphi 0, %s78
      %s96 = sphi 0, %s96
      %s98 = sphi 0, %s96
      %s99 = sphi 0, %s98
      %s113 = sphi 0, %s99
      %s117 = sphi 0, %s117
      %s119 = sphi 0, %s117
      %s120 = sphi 0, %s119
      %s134 = sphi 0, %s120
      %s138 = sphi 0, %s138
      %s140 = sphi 0, %s138
      %s141 = sphi 0, %s140
      %s155 = sphi 0, %s141
      %s159 = sphi 0, %s159
      %s161 = sphi 0, %s159
      %s162 = sphi 0, %s161
      %s176 = sphi 0, %s162
      %s182 = sphi 0, %s184
      %s185 = sphi 0, %s182
      %s186 = sphi 0, %s185
      %s202 = sphi 0, %s186
    $region4: #{tpu_custom_call.1} parent=1 // loop_header_branch
      %23 = sbr.rel (%p21) target = $region8
    $region5: #{tpu_custom_call.1} parent=1 // loop_body
      %s25 = ssub.s32 %s20, 1
      %s26 = ssub.s32 %s20, 2
      %s27 = sadd.s32 %s20, 1
      %s28 = ssub.s32 %s20, %s27
      %p29 = scmp.eq.s32.totalorder %s28, 0
      %s31 = sadd.s32 %s30, 1
      %s32 = scalar_select %p29, %s30, %s31
      %p35 = pneg %p29
      %p36 = scmp.eq.s32.totalorder %s20, 1
      %p37 = por %p35, %p36
      %p38 = scmp.ne.s32.totalorder %s30, %s33
      %p39 = scmp.eq.s32.totalorder %s20, 0
      %p40 = por %p38, %p39
      %p41 = scmp.ne.s32.totalorder %s30, %s33
      %p42 = scmp.eq.s32.totalorder %s25, 1
      %p43 = por %p41, %p42
      %p44 = scmp.ne.s32.totalorder %s33, %s34
      %p45 = scmp.eq.s32.totalorder %s25, 0
      %p46 = por %p44, %p45
      %p47 = scmp.ne.s32.totalorder %s33, %s34
      %p48 = scmp.eq.s32.totalorder %s26, 1
      %p49 = por %p47, %p48
      %p51 = scmp.ne.s32.totalorder %s34, %s50
      %p52 = scmp.eq.s32.totalorder %s26, 0
      %p53 = por %p51, %p52
      %s55 = sadd.s32 %s54, 1
      %p58 = scmp.eq.s32.totalorder %s20, 1
      %p59 = scmp.ne.s32.totalorder %s54, %s56
      %p60 = scmp.eq.s32.totalorder %s20, 0
      %p61 = por %p59, %p60
      %p62 = scmp.ne.s32.totalorder %s54, %s56
      %p63 = scmp.eq.s32.totalorder %s25, 1
      %p64 = por %p62, %p63
      %p65 = scmp.ne.s32.totalorder %s56, %s57
      %p66 = scmp.eq.s32.totalorder %s25, 0
      %p67 = por %p65, %p66
      %p68 = scmp.ne.s32.totalorder %s56, %s57
      %p69 = scmp.eq.s32.totalorder %s26, 1
      %p70 = por %p68, %p69
      %p72 = scmp.ne.s32.totalorder %s57, %s71
      %p73 = scmp.eq.s32.totalorder %s26, 0
      %p74 = por %p72, %p73
      %s76 = sadd.s32 %s75, 1
      %p79 = scmp.eq.s32.totalorder %s20, 1
      %p80 = scmp.ne.s32.totalorder %s75, %s77
      %p81 = scmp.eq.s32.totalorder %s20, 0
      %p82 = por %p80, %p81
      %p83 = scmp.ne.s32.totalorder %s75, %s77
      %p84 = scmp.eq.s32.totalorder %s25, 1
      %p85 = por %p83, %p84
      %p86 = scmp.ne.s32.totalorder %s77, %s78
      %p87 = scmp.eq.s32.totalorder %s25, 0
      %p88 = por %p86, %p87
      %p89 = scmp.ne.s32.totalorder %s77, %s78
      %p90 = scmp.eq.s32.totalorder %s26, 1
      %p91 = por %p89, %p90
      %p93 = scmp.ne.s32.totalorder %s78, %s92
      %p94 = scmp.eq.s32.totalorder %s26, 0
      %p95 = por %p93, %p94
      %s97 = sadd.s32 %s96, 1
      %p100 = scmp.eq.s32.totalorder %s20, 1
      %p101 = scmp.ne.s32.totalorder %s96, %s98
      %p102 = scmp.eq.s32.totalorder %s20, 0
      %p103 = por %p101, %p102
      %p104 = scmp.ne.s32.totalorder %s96, %s98
      %p105 = scmp.eq.s32.totalorder %s25, 1
      %p106 = por %p104, %p105
      %p107 = scmp.ne.s32.totalorder %s98, %s99
      %p108 = scmp.eq.s32.totalorder %s25, 0
      %p109 = por %p107, %p108
      %p110 = scmp.ne.s32.totalorder %s98, %s99
      %p111 = scmp.eq.s32.totalorder %s26, 1
      %p112 = por %p110, %p111
      %p114 = scmp.ne.s32.totalorder %s99, %s113
      %p115 = scmp.eq.s32.totalorder %s26, 0
      %p116 = por %p114, %p115
      %s118 = sadd.s32 %s117, 1
      %p121 = scmp.eq.s32.totalorder %s20, 1
      %p122 = scmp.ne.s32.totalorder %s117, %s119
      %p123 = scmp.eq.s32.totalorder %s20, 0
      %p124 = por %p122, %p123
      %p125 = scmp.ne.s32.totalorder %s117, %s119
      %p126 = scmp.eq.s32.totalorder %s25, 1
      %p127 = por %p125, %p126
      %p128 = scmp.ne.s32.totalorder %s119, %s120
      %p129 = scmp.eq.s32.totalorder %s25, 0
      %p130 = por %p128, %p129
      %p131 = scmp.ne.s32.totalorder %s119, %s120
      %p132 = scmp.eq.s32.totalorder %s26, 1
      %p133 = por %p131, %p132
      %p135 = scmp.ne.s32.totalorder %s120, %s134
      %p136 = scmp.eq.s32.totalorder %s26, 0
      %p137 = por %p135, %p136
      %s139 = sadd.s32 %s138, 1
      %p142 = scmp.eq.s32.totalorder %s20, 1
      %p143 = scmp.ne.s32.totalorder %s138, %s140
      %p144 = scmp.eq.s32.totalorder %s20, 0
      %p145 = por %p143, %p144
      %p146 = scmp.ne.s32.totalorder %s138, %s140
      %p147 = scmp.eq.s32.totalorder %s25, 1
      %p148 = por %p146, %p147
      %p149 = scmp.ne.s32.totalorder %s140, %s141
      %p150 = scmp.eq.s32.totalorder %s25, 0
      %p151 = por %p149, %p150
      %p152 = scmp.ne.s32.totalorder %s140, %s141
      %p153 = scmp.eq.s32.totalorder %s26, 1
      %p154 = por %p152, %p153
      %p156 = scmp.ne.s32.totalorder %s141, %s155
      %p157 = scmp.eq.s32.totalorder %s26, 0
      %p158 = por %p156, %p157
      %s160 = sadd.s32 %s159, 1
      %p163 = scmp.eq.s32.totalorder %s20, 1
      %p164 = scmp.ne.s32.totalorder %s159, %s161
      %p165 = scmp.eq.s32.totalorder %s20, 0
      %p166 = por %p164, %p165
      %p167 = scmp.ne.s32.totalorder %s159, %s161
      %p168 = scmp.eq.s32.totalorder %s25, 1
      %p169 = por %p167, %p168
      %p170 = scmp.ne.s32.totalorder %s161, %s162
      %p171 = scmp.eq.s32.totalorder %s25, 0
      %p172 = por %p170, %p171
      %p173 = scmp.ne.s32.totalorder %s161, %s162
      %p174 = scmp.eq.s32.totalorder %s26, 1
      %p175 = por %p173, %p174
      %p177 = scmp.ne.s32.totalorder %s162, %s176
      %p178 = scmp.eq.s32.totalorder %s26, 0
      %p179 = por %p177, %p178
      %s180 = ssub.s32 %s20, %s27
      %p181 = scmp.eq.s32.totalorder %s180, 0
      %s183 = sadd.s32 %s182, 1
      %s184 = scalar_select %p181, %s182, %s183
      %p187 = pneg %p181
      %p188 = scmp.eq.s32.totalorder %s20, 1
      %p189 = por %p187, %p188
      %p190 = scmp.ne.s32.totalorder %s182, %s185
      %p191 = scmp.eq.s32.totalorder %s20, 0
      %p192 = por %p190, %p191
      %p193 = scmp.ne.s32.totalorder %s182, %s185
      %p194 = scmp.eq.s32.totalorder %s25, 1
      %p195 = por %p193, %p194
      %p196 = scmp.ne.s32.totalorder %s185, %s186
      %p197 = scmp.eq.s32.totalorder %s25, 0
      %p198 = por %p196, %p197
      %p199 = scmp.ne.s32.totalorder %s185, %s186
      %p200 = scmp.eq.s32.totalorder %s26, 1
      %p201 = por %p199, %p200
      %p203 = scmp.ne.s32.totalorder %s186, %s202
      %p204 = scmp.eq.s32.totalorder %s26, 0
      %p205 = por %p203, %p204
      %p206 = scmp.le.s32.totalorder 1, %s20
      %p207 = scmp.lt.s32.totalorder %s20, 3
      %p208 = pnand %p206, %p207
      %p209 = pneg %p208
      // Predicated region
      $region9: #{tpu_custom_call.1} parent=5 // pred_check
        _
      $region10: #{tpu_custom_call.1} parent=5 // pred_check_branch
        %211 = sbr.rel (%p208) target = $region12
      $region11: #{tpu_custom_call.1} parent=5 // pred_region
        %s212 = ssub.s32 %s20, 1
        // Predicated region
        $region13: #{tpu_custom_call.1} parent=11 // pred_check
          %p213 = pneg %p67
        $region14: #{tpu_custom_call.1} parent=11 // pred_check_branch
          %215 = sbr.rel (%p213) target = $region16
        $region15: #{tpu_custom_call.1} parent=11 // pred_region
          _
        $region16: #{tpu_custom_call.1} parent=11 // pred_fallthru
          _
        // Predicated region
        $region17: #{tpu_custom_call.1} parent=11 // pred_check
          %p216 = pneg %p88
        $region18: #{tpu_custom_call.1} parent=11 // pred_check_branch
          %218 = sbr.rel (%p216) target = $region20
        $region19: #{tpu_custom_call.1} parent=11 // pred_region
          _
        $region20: #{tpu_custom_call.1} parent=11 // pred_fallthru
          _
        // Predicated region
        $region21: #{tpu_custom_call.1} parent=11 // pred_check
          %p219 = pneg %p109
        $region22: #{tpu_custom_call.1} parent=11 // pred_check_branch
          %221 = sbr.rel (%p219) target = $region24
        $region23: #{tpu_custom_call.1} parent=11 // pred_region
          %s223 = ssub.s32 8192, 8192
          %224 = vsyncadd [#allocation6], %s223
          %s225 = sshll.u32 [#allocation5], 4
          %s226 = int_to_ptr.vmem [resolvable:$true] %s225
          %231 = dma.hbm_to_vmem [thread:$0]  %s3, 8192, %s226, [#allocation6], 512, 512, 32
        $region24: #{tpu_custom_call.1} parent=11 // pred_fallthru
          _
        // Predicated region
        $region25: #{tpu_custom_call.1} parent=11 // pred_check
          %p232 = pneg %p130
        $region26: #{tpu_custom_call.1} parent=11 // pred_check_branch
          %234 = sbr.rel (%p232) target = $region28
        $region27: #{tpu_custom_call.1} parent=11 // pred_region
          _
        $region28: #{tpu_custom_call.1} parent=11 // pred_fallthru
          _
        // Predicated region
        $region29: #{tpu_custom_call.1} parent=11 // pred_check
          %p235 = pneg %p151
        $region30: #{tpu_custom_call.1} parent=11 // pred_check_branch
          %237 = sbr.rel (%p235) target = $region32
        $region31: #{tpu_custom_call.1} parent=11 // pred_region
          %s239 = ssub.s32 8192, 8192
          %240 = vsyncadd [#allocation6], %s239
          %s241 = sshll.u32 [#allocation7], 4
          %s242 = int_to_ptr.vmem [resolvable:$true] %s241
          %247 = dma.hbm_to_vmem [thread:$0]  %s5, 8192, %s242, [#allocation6], 128, 128, 8
        $region32: #{tpu_custom_call.1} parent=11 // pred_fallthru
          _
        // Predicated region
        $region33: #{tpu_custom_call.1} parent=11 // pred_check
          %p248 = pneg %p172
        $region34: #{tpu_custom_call.1} parent=11 // pred_check_branch
          %250 = sbr.rel (%p248) target = $region36
        $region35: #{tpu_custom_call.1} parent=11 // pred_region
          _
        $region36: #{tpu_custom_call.1} parent=11 // pred_fallthru
          _
      $region12: #{tpu_custom_call.1} parent=5 // pred_fallthru
        _
      %p251 = scmp.lt.s32.totalorder %s20, 2
      // Predicated region
      $region37: #{tpu_custom_call.1} parent=5 // pred_check
        %p252 = pneg %p251
      $region38: #{tpu_custom_call.1} parent=5 // pred_check_branch
        %254 = sbr.rel (%p252) target = $region40
      $region39: #{tpu_custom_call.1} parent=5 // pred_region
        // Predicated region
        $region41: #{tpu_custom_call.1} parent=39 // pred_check
          %p255 = pneg %p40
        $region42: #{tpu_custom_call.1} parent=39 // pred_check_branch
          %257 = sbr.rel (%p255) target = $region44
        $region43: #{tpu_custom_call.1} parent=39 // pred_region
          %s258 = sand.u32 %s30, 1
          %s259 = scalar_lea.sflag [#allocation3], %s258
          %s260 = sand.u32 %s30, 1
          %s261 = smul.addr %s260, 32
          %s262 = scalar_lea.vmem [#allocation2], %s261
          %s263 = smul.u32 4, %s20
          %s265 = ssub.s32 512, 512
          %266 = vsyncadd %s259, %s265
          %s267 = smul.addr %s263, 128
          %s268 = scalar_lea.hbm %s0, %s267
          %s269 = sshll.u32 %s262, 4
          %s270 = int_to_ptr.vmem [resolvable:$true] %s269
          %275 = dma.hbm_to_vmem [thread:$0]  %s268, 512, %s270, %s259, 128, 128, 8
        $region44: #{tpu_custom_call.1} parent=39 // pred_fallthru
          _
      $region40: #{tpu_custom_call.1} parent=5 // pred_fallthru
        _
      %p276 = scmp.le.s32.totalorder 1, %s20
      %p277 = scmp.lt.s32.totalorder %s20, 3
      %p278 = pnand %p276, %p277
      %p279 = pneg %p278
      // Predicated region
      $region45: #{tpu_custom_call.1} parent=5 // pred_check
        _
      $region46: #{tpu_custom_call.1} parent=5 // pred_check_branch
        %281 = sbr.rel (%p278) target = $region48
      $region47: #{tpu_custom_call.1} parent=5 // pred_region
        %s282 = ssub.s32 %s20, 1
        %s283 = sand.u32 %s33, 1
        %s284 = scalar_lea.sflag [#allocation3], %s283
        %s285 = sand.u32 %s33, 1
        %s286 = smul.addr %s285, 32
        %s287 = scalar_lea.vmem [#allocation2], %s286
        // Predicated region
        $region49: #{tpu_custom_call.1} parent=47 // pred_check
          %p288 = pneg %p46
        $region50: #{tpu_custom_call.1} parent=47 // pred_check_branch
          %290 = sbr.rel (%p288) target = $region52
        $region51: #{tpu_custom_call.1} parent=47 // pred_region
          %291 = dma.done %s284, 512
        $region52: #{tpu_custom_call.1} parent=47 // pred_fallthru
          _
        // Predicated region
        $region53: #{tpu_custom_call.1} parent=47 // pred_check
          %p292 = pneg %p109
        $region54: #{tpu_custom_call.1} parent=47 // pred_check_branch
          %294 = sbr.rel (%p292) target = $region56
        $region55: #{tpu_custom_call.1} parent=47 // pred_region
          %295 = dma.done [#allocation6], 8192
        $region56: #{tpu_custom_call.1} parent=47 // pred_fallthru
          _
        // Predicated region
        $region57: #{tpu_custom_call.1} parent=47 // pred_check
          %p296 = pneg %p151
        $region58: #{tpu_custom_call.1} parent=47 // pred_check_branch
          %298 = sbr.rel (%p296) target = $region60
        $region59: #{tpu_custom_call.1} parent=47 // pred_region
          %299 = dma.done [#allocation6], 8192
        $region60: #{tpu_custom_call.1} parent=47 // pred_fallthru
          _
        %s300 = sand.u32 %s33, 1
        %s301 = scalar_lea.sflag [#allocation3], %s300
        %s302 = sand.u32 %s33, 1
        %s303 = smul.addr %s302, 32
        %s304 = scalar_lea.vmem [#allocation2], %s303
        %p305 = pneg %p46
        %p306 = pneg %p43
        %p307 = pneg %p67
        %p308 = pneg %p64
        %p309 = pneg %p88
        %p310 = pneg %p85
        %p311 = pneg %p109
        %p312 = pneg %p106
        %p313 = pneg %p130
        %p314 = pneg %p127
        %p315 = pneg %p151
        %p316 = pneg %p148
        %p317 = pneg %p172
        %p318 = pneg %p169
        %p319 = pneg %p198
        %p320 = pneg %p195
        %s321 = sand.u32 %s185, 1
        %s322 = scalar_lea.sflag [#allocation4], %s321
        %s323 = sand.u32 %s185, 1
        %s324 = smul.addr %s323, 32
        %s325 = scalar_lea.vmem [#allocation8], %s324
        %s326 = smul.u32 4, %s25
        %s327 = smul.u32 4, %s25
        %v328 = vld [vmem:[%s287] sm:$0xff]
        %v329 = vld [vmem:[%s287 + $0x8] sm:$0xff]
        %v330 = vld [vmem:[%s287 + $0x10] sm:$0xff]
        %v331 = vld [vmem:[%s287 + $0x18] sm:$0xff]
        %332 = vadd.xlane.f32.xlu0 %v328
        %v333 = vpop.xlane.xlu0 %332
        %334 = vadd.xlane.f32.xlu0 %v329
        %v335 = vpop.xlane.xlu0 %334
        %336 = vadd.xlane.f32.xlu0 %v330
        %v337 = vpop.xlane.xlu0 %336
        %338 = vadd.xlane.f32.xlu0 %v331
        %v339 = vpop.xlane.xlu0 %338
        %v340 = vrcp.pop 128.0
        %v341 = vmul.f32 %v333, %v340
        %v342 = vmul.f32 %v335, %v340
        %v343 = vmul.f32 %v337, %v340
        %v344 = vmul.f32 %v339, %v340
        %v345 = vsub.f32 %v328, %v341
        %v346 = vsub.f32 %v329, %v342
        %v347 = vsub.f32 %v330, %v343
        %v348 = vsub.f32 %v331, %v344
        %v349 = vmul.f32 %v345, %v345
        %v350 = vmul.f32 %v346, %v346
        %v351 = vmul.f32 %v347, %v347
        %v352 = vmul.f32 %v348, %v348
        %353 = vadd.xlane.f32.xlu0 %v349
        %v354 = vpop.xlane.xlu0 %353
        %355 = vadd.xlane.f32.xlu0 %v350
        %v356 = vpop.xlane.xlu0 %355
        %357 = vadd.xlane.f32.xlu0 %v351
        %v358 = vpop.xlane.xlu0 %357
        %359 = vadd.xlane.f32.xlu0 %v352
        %v360 = vpop.xlane.xlu0 %359
        %v361 = vmul.f32 %v354, %v340
        %v362 = vmul.f32 %v356, %v340
        %v363 = vmul.f32 %v358, %v340
        %v364 = vmul.f32 %v360, %v340
        %v365 = vadd.f32 %v361, 1e-05
        %v366 = vadd.f32 %v362, 1e-05
        %v367 = vadd.f32 %v363, 1e-05
        %v368 = vadd.f32 %v364, 1e-05
        %v369 = vrsqrt.pop %v365
        %v370 = vrsqrt.pop %v366
        %v371 = vrsqrt.pop %v367
        %v372 = vrsqrt.pop %v368
        %v373 = vmul.f32 %v345, %v369
        %v374 = vmul.f32 %v346, %v370
        %v375 = vmul.f32 %v347, %v371
        %v376 = vmul.f32 %v348, %v372
        %v377 = vld [vmem:[%s1] sm:$0x1]
        %v379 = vlaneseq
        %v380 = vshrl.u32 %v379, 7
        %v381 = vsub.s32 0, %v380
        %v382 = vrot.slane %v377, %v381
        %v384 = vmul.f32 %v373, %v382
        %v385 = vmul.f32 %v374, %v382
        %v386 = vmul.f32 %v375, %v382
        %v387 = vmul.f32 %v376, %v382
        %v388 = vld [vmem:[%s2] sm:$0x1]
        %v390 = vlaneseq
        %v391 = vshrl.u32 %v390, 7
        %v392 = vsub.s32 0, %v391
        %v393 = vrot.slane %v388, %v392
        %v395 = vadd.f32 %v384, %v393
        %v396 = vadd.f32 %v385, %v393
        %v397 = vadd.f32 %v386, %v393
        %v398 = vadd.f32 %v387, %v393
        %v399 = vld [vmem:[#allocation5] sm:$0xff]
        %v400 = vld [vmem:[#allocation5 + $0x8] sm:$0xff]
        %v401 = vld [vmem:[#allocation5 + $0x10] sm:$0xff]
        %v402 = vld [vmem:[#allocation5 + $0x18] sm:$0xff]
        %v403 = vld [vmem:[#allocation5 + $0x20] sm:$0xff]
        %v404 = vld [vmem:[#allocation5 + $0x28] sm:$0xff]
        %v405 = vld [vmem:[#allocation5 + $0x30] sm:$0xff]
        %v406 = vld [vmem:[#allocation5 + $0x38] sm:$0xff]
        %v407 = vld [vmem:[#allocation5 + $0x40] sm:$0xff]
        %v408 = vld [vmem:[#allocation5 + $0x48] sm:$0xff]
        %v409 = vld [vmem:[#allocation5 + $0x50] sm:$0xff]
        %v410 = vld [vmem:[#allocation5 + $0x58] sm:$0xff]
        %v411 = vld [vmem:[#allocation5 + $0x60] sm:$0xff]
        %v412 = vld [vmem:[#allocation5 + $0x68] sm:$0xff]
        %v413 = vld [vmem:[#allocation5 + $0x70] sm:$0xff]
        %v414 = vld [vmem:[#allocation5 + $0x78] sm:$0xff]
        %v415 = vld [vmem:[#allocation5 + $0x80] sm:$0xff]
        %v416 = vld [vmem:[#allocation5 + $0x88] sm:$0xff]
        %v417 = vld [vmem:[#allocation5 + $0x90] sm:$0xff]
        %v418 = vld [vmem:[#allocation5 + $0x98] sm:$0xff]
        %v419 = vld [vmem:[#allocation5 + $0xa0] sm:$0xff]
        %v420 = vld [vmem:[#allocation5 + $0xa8] sm:$0xff]
        %v421 = vld [vmem:[#allocation5 + $0xb0] sm:$0xff]
        %v422 = vld [vmem:[#allocation5 + $0xb8] sm:$0xff]
        %v423 = vld [vmem:[#allocation5 + $0xc0] sm:$0xff]
        %v424 = vld [vmem:[#allocation5 + $0xc8] sm:$0xff]
        %v425 = vld [vmem:[#allocation5 + $0xd0] sm:$0xff]
        %v426 = vld [vmem:[#allocation5 + $0xd8] sm:$0xff]
        %v427 = vld [vmem:[#allocation5 + $0xe0] sm:$0xff]
        %v428 = vld [vmem:[#allocation5 + $0xe8] sm:$0xff]
        %v429 = vld [vmem:[#allocation5 + $0xf0] sm:$0xff]
        %v430 = vld [vmem:[#allocation5 + $0xf8] sm:$0xff]
        %v431 = vld [vmem:[#allocation5 + $0x100] sm:$0xff]
        %v432 = vld [vmem:[#allocation5 + $0x108] sm:$0xff]
        %v433 = vld [vmem:[#allocation5 + $0x110] sm:$0xff]
        %v434 = vld [vmem:[#allocation5 + $0x118] sm:$0xff]
        %v435 = vld [vmem:[#allocation5 + $0x120] sm:$0xff]
        %v436 = vld [vmem:[#allocation5 + $0x128] sm:$0xff]
        %v437 = vld [vmem:[#allocation5 + $0x130] sm:$0xff]
        %v438 = vld [vmem:[#allocation5 + $0x138] sm:$0xff]
        %v439 = vld [vmem:[#allocation5 + $0x140] sm:$0xff]
        %v440 = vld [vmem:[#allocation5 + $0x148] sm:$0xff]
        %v441 = vld [vmem:[#allocation5 + $0x150] sm:$0xff]
        %v442 = vld [vmem:[#allocation5 + $0x158] sm:$0xff]
        %v443 = vld [vmem:[#allocation5 + $0x160] sm:$0xff]
        %v444 = vld [vmem:[#allocation5 + $0x168] sm:$0xff]
        %v445 = vld [vmem:[#allocation5 + $0x170] sm:$0xff]
        %v446 = vld [vmem:[#allocation5 + $0x178] sm:$0xff]
        %v447 = vld [vmem:[#allocation5 + $0x180] sm:$0xff]
        %v448 = vld [vmem:[#allocation5 + $0x188] sm:$0xff]
        %v449 = vld [vmem:[#allocation5 + $0x190] sm:$0xff]
        %v450 = vld [vmem:[#allocation5 + $0x198] sm:$0xff]
        %v451 = vld [vmem:[#allocation5 + $0x1a0] sm:$0xff]
        %v452 = vld [vmem:[#allocation5 + $0x1a8] sm:$0xff]
        %v453 = vld [vmem:[#allocation5 + $0x1b0] sm:$0xff]
        %v454 = vld [vmem:[#allocation5 + $0x1b8] sm:$0xff]
        %v455 = vld [vmem:[#allocation5 + $0x1c0] sm:$0xff]
        %v456 = vld [vmem:[#allocation5 + $0x1c8] sm:$0xff]
        %v457 = vld [vmem:[#allocation5 + $0x1d0] sm:$0xff]
        %v458 = vld [vmem:[#allocation5 + $0x1d8] sm:$0xff]
        %v459 = vld [vmem:[#allocation5 + $0x1e0] sm:$0xff]
        %v460 = vld [vmem:[#allocation5 + $0x1e8] sm:$0xff]
        %v461 = vld [vmem:[#allocation5 + $0x1f0] sm:$0xff]
        %v462 = vld [vmem:[#allocation5 + $0x1f8] sm:$0xff]
        %v463 = vld [vmem:[%s4] sm:$0xf]
        %v465 = vlaneseq
        %v466 = vshrl.u32 %v465, 7
        %v467 = vsub.s32 0, %v466
        %v468 = vrot.slane %v463, %v467
        %v469 = vlaneseq
        %v470 = vshrl.u32 %v469, 7
        %v471 = vsub.s32 1, %v470
        %v472 = vrot.slane %v463, %v471
        %v473 = vlaneseq
        %v474 = vshrl.u32 %v473, 7
        %v475 = vsub.s32 2, %v474
        %v476 = vrot.slane %v463, %v475
        %v477 = vlaneseq
        %v478 = vshrl.u32 %v477, 7
        %v479 = vsub.s32 3, %v478
        %v480 = vrot.slane %v463, %v479
        %485 = vmatprep.subr.mxu0 %v460
        %486 = vmatpush1.msra.mxu0 %v459
        %487 = vmatprep.subr.mxu0 %v456
        %488 = vmatpush1.msra.mxu0 %v455
        %489 = vmatprep.subr.mxu0 %v452
        %490 = vmatpush1.msra.mxu0 %v451
        %491 = vmatprep.subr.mxu0 %v448
        %492 = vmatpush1.msra.mxu0 %v447
        %493 = vmatprep.subr.mxu0 %v444
        %494 = vmatpush1.msra.mxu0 %v443
        %495 = vmatprep.subr.mxu0 %v440
        %496 = vmatpush1.msra.mxu0 %v439
        %497 = vmatprep.subr.mxu0 %v436
        %498 = vmatpush1.msra.mxu0 %v435
        %499 = vmatprep.subr.mxu0 %v432
        %500 = vmatpush1.msra.mxu0 %v431
        %501 = vmatprep.subr.mxu0 %v428
        %502 = vmatpush1.msra.mxu0 %v427
        %503 = vmatprep.subr.mxu0 %v424
        %504 = vmatpush1.msra.mxu0 %v423
        %505 = vmatprep.subr.mxu0 %v420
        %506 = vmatpush1.msra.mxu0 %v419
        %507 = vmatprep.subr.mxu0 %v416
        %508 = vmatpush1.msra.mxu0 %v415
        %509 = vmatprep.subr.mxu0 %v412
        %510 = vmatpush1.msra.mxu0 %v411
        %511 = vmatprep.subr.mxu0 %v408
        %512 = vmatpush1.msra.mxu0 %v407
        %513 = vmatprep.subr.mxu0 %v404
        %514 = vmatpush1.msra.mxu0 %v403
        %515 = vmatprep.subr.mxu0 %v400
        %516 = vmatpush1.msra.mxu0 %v399
        %517 = vmatprep.subr.mxu0 0.0
        %518 = vmatpush2.msra.mxu0 0.0
        %519 = vmatprep.subr.mxu0 0.0
        %520 = vmatpush2.msra.mxu0 0.0
        %521 = vmatprep.subr.mxu0 0.0
        %522 = vmatpush2.msra.mxu0 0.0
        %523 = vmatprep.subr.mxu0 0.0
        %524 = vmatpush2.msra.mxu0 0.0
        %525 = vmatprep.subr.mxu0 0.0
        %526 = vmatpush2.msra.mxu0 0.0
        %527 = vmatprep.subr.mxu0 0.0
        %528 = vmatpush2.msra.mxu0 0.0
        %529 = vmatprep.subr.mxu0 0.0
        %530 = vmatpush2.msra.mxu0 0.0
        %531 = vmatprep.subr.mxu0 0.0
        %532 = vmatpush2.msra.mxu0 0.0
        %533 = vmatprep.subr.mxu0 0.0
        %534 = vmatpush2.msra.mxu0 0.0
        %535 = vmatprep.subr.mxu0 0.0
        %536 = vmatpush2.msra.mxu0 0.0
        %537 = vmatprep.subr.mxu0 0.0
        %538 = vmatpush2.msra.mxu0 0.0
        %539 = vmatprep.subr.mxu0 0.0
        %540 = vmatpush2.msra.mxu0 0.0
        %541 = vmatprep.subr.mxu0 0.0
        %542 = vmatpush2.msra.mxu0 0.0
        %543 = vmatprep.subr.mxu0 0.0
        %544 = vmatpush2.msra.mxu0 0.0
        %545 = vmatprep.subr.mxu0 0.0
        %546 = vmatpush2.msra.mxu0 0.0
        %547 = vmatprep.subr.mxu0 0.0
        %548 = vmatpush2.msra.mxu0 0.0
        %549 = vmatprep.mubr.f32.mxu0 0.0
        %550 = vmatmul.mubr.f32.gmra.mxu0 %v395
        %v551 = vpop.f32.mrf.mxu0
        %v552 = vadd.f32 %v468, %v551
        %v553 = vpop.f32.mrf.mxu0
        %v554 = vadd.f32 %v472, %v553
        %555 = vmatprep.mubr.f32.mxu0 0.0
        %556 = vmatmul.mubr.f32.gmra.mxu0 %v396
        %v557 = vpop.f32.mrf.mxu0
        %v558 = vadd.f32 %v468, %v557
        %v559 = vpop.f32.mrf.mxu0
        %v560 = vadd.f32 %v472, %v559
        %561 = vmatprep.mubr.f32.mxu0 0.0
        %562 = vmatmul.mubr.f32.gmra.mxu0 %v397
        %v563 = vpop.f32.mrf.mxu0
        %v564 = vadd.f32 %v468, %v563
        %v565 = vpop.f32.mrf.mxu0
        %v566 = vadd.f32 %v472, %v565
        %567 = vmatprep.mubr.f32.mxu0 0.0
        %568 = vmatmul.mubr.f32.gmra.mxu0 %v398
        %v569 = vpop.f32.mrf.mxu0
        %v570 = vadd.f32 %v468, %v569
        %v571 = vpop.f32.mrf.mxu0
        %v572 = vadd.f32 %v472, %v571
        %573 = vdwg.mxu0
        %574 = vmatprep.subr.mxu0 %v462
        %575 = vmatpush1.msra.mxu0 %v461
        %576 = vmatprep.subr.mxu0 %v458
        %577 = vmatpush1.msra.mxu0 %v457
        %578 = vmatprep.subr.mxu0 %v454
        %579 = vmatpush1.msra.mxu0 %v453
        %580 = vmatprep.subr.mxu0 %v450
        %581 = vmatpush1.msra.mxu0 %v449
        %582 = vmatprep.subr.mxu0 %v446
        %583 = vmatpush1.msra.mxu0 %v445
        %584 = vmatprep.subr.mxu0 %v442
        %585 = vmatpush1.msra.mxu0 %v441
        %586 = vmatprep.subr.mxu0 %v438
        %587 = vmatpush1.msra.mxu0 %v437
        %588 = vmatprep.subr.mxu0 %v434
        %589 = vmatpush1.msra.mxu0 %v433
        %590 = vmatprep.subr.mxu0 %v430
        %591 = vmatpush1.msra.mxu0 %v429
        %592 = vmatprep.subr.mxu0 %v426
        %593 = vmatpush1.msra.mxu0 %v425
        %594 = vmatprep.subr.mxu0 %v422
        %595 = vmatpush1.msra.mxu0 %v421
        %596 = vmatprep.subr.mxu0 %v418
        %597 = vmatpush1.msra.mxu0 %v417
        %598 = vmatprep.subr.mxu0 %v414
        %599 = vmatpush1.msra.mxu0 %v413
        %600 = vmatprep.subr.mxu0 %v410
        %601 = vmatpush1.msra.mxu0 %v409
        %602 = vmatprep.subr.mxu0 %v406
        %603 = vmatpush1.msra.mxu0 %v405
        %604 = vmatprep.subr.mxu0 %v402
        %605 = vmatpush1.msra.mxu0 %v401
        %606 = vmatprep.subr.mxu0 0.0
        %607 = vmatpush2.msra.mxu0 0.0
        %608 = vmatprep.subr.mxu0 0.0
        %609 = vmatpush2.msra.mxu0 0.0
        %610 = vmatprep.subr.mxu0 0.0
        %611 = vmatpush2.msra.mxu0 0.0
        %612 = vmatprep.subr.mxu0 0.0
        %613 = vmatpush2.msra.mxu0 0.0
        %614 = vmatprep.subr.mxu0 0.0
        %615 = vmatpush2.msra.mxu0 0.0
        %616 = vmatprep.subr.mxu0 0.0
        %617 = vmatpush2.msra.mxu0 0.0
        %618 = vmatprep.subr.mxu0 0.0
        %619 = vmatpush2.msra.mxu0 0.0
        %620 = vmatprep.subr.mxu0 0.0
        %621 = vmatpush2.msra.mxu0 0.0
        %622 = vmatprep.subr.mxu0 0.0
        %623 = vmatpush2.msra.mxu0 0.0
        %624 = vmatprep.subr.mxu0 0.0
        %625 = vmatpush2.msra.mxu0 0.0
        %626 = vmatprep.subr.mxu0 0.0
        %627 = vmatpush2.msra.mxu0 0.0
        %628 = vmatprep.subr.mxu0 0.0
        %629 = vmatpush2.msra.mxu0 0.0
        %630 = vmatprep.subr.mxu0 0.0
        %631 = vmatpush2.msra.mxu0 0.0
        %632 = vmatprep.subr.mxu0 0.0
        %633 = vmatpush2.msra.mxu0 0.0
        %634 = vmatprep.subr.mxu0 0.0
        %635 = vmatpush2.msra.mxu0 0.0
        %636 = vmatprep.subr.mxu0 0.0
        %637 = vmatpush2.msra.mxu0 0.0
        %638 = vmatprep.mubr.f32.mxu0 0.0
        %639 = vmatmul.mubr.f32.gmra.mxu0 %v395
        %v640 = vpop.f32.mrf.mxu0
        %v641 = vadd.f32 %v476, %v640
        %v642 = vpop.f32.mrf.mxu0
        %v643 = vadd.f32 %v480, %v642
        %644 = vmatprep.mubr.f32.mxu0 0.0
        %645 = vmatmul.mubr.f32.gmra.mxu0 %v396
        %v646 = vpop.f32.mrf.mxu0
        %v647 = vadd.f32 %v476, %v646
        %v648 = vpop.f32.mrf.mxu0
        %v649 = vadd.f32 %v480, %v648
        %650 = vmatprep.mubr.f32.mxu0 0.0
        %651 = vmatmul.mubr.f32.gmra.mxu0 %v397
        %v652 = vpop.f32.mrf.mxu0
        %v653 = vadd.f32 %v476, %v652
        %v654 = vpop.f32.mrf.mxu0
        %v655 = vadd.f32 %v480, %v654
        %656 = vmatprep.mubr.f32.mxu0 0.0
        %657 = vmatmul.mubr.f32.gmra.mxu0 %v398
        %v658 = vpop.f32.mrf.mxu0
        %v659 = vadd.f32 %v476, %v658
        %v660 = vpop.f32.mrf.mxu0
        %v661 = vadd.f32 %v480, %v660
        %662 = vdwg.mxu0
        %v663 = vmin.f32 %v552, 20.0
        %v664 = vmin.f32 %v554, 20.0
        %v665 = vmin.f32 %v641, 20.0
        %v666 = vmin.f32 %v643, 20.0
        %v667 = vmin.f32 %v558, 20.0
        %v668 = vmin.f32 %v560, 20.0
        %v669 = vmin.f32 %v647, 20.0
        %v670 = vmin.f32 %v649, 20.0
        %v671 = vmin.f32 %v564, 20.0
        %v672 = vmin.f32 %v566, 20.0
        %v673 = vmin.f32 %v653, 20.0
        %v674 = vmin.f32 %v655, 20.0
        %v675 = vmin.f32 %v570, 20.0
        %v676 = vmin.f32 %v572, 20.0
        %v677 = vmin.f32 %v659, 20.0
        %v678 = vmin.f32 %v661, 20.0
        %v679 = vmul.f32 %v663, 1.442695
        %v680 = vpow.pop %v679
        %v681 = vmul.f32 %v664, 1.442695
        %v682 = vpow.pop %v681
        %v683 = vmul.f32 %v665, 1.442695
        %v684 = vpow.pop %v683
        %v685 = vmul.f32 %v666, 1.442695
        %v686 = vpow.pop %v685
        %v687 = vmul.f32 %v667, 1.442695
        %v688 = vpow.pop %v687
        %v689 = vmul.f32 %v668, 1.442695
        %v690 = vpow.pop %v689
        %v691 = vmul.f32 %v669, 1.442695
        %v692 = vpow.pop %v691
        %v693 = vmul.f32 %v670, 1.442695
        %v694 = vpow.pop %v693
        %v695 = vmul.f32 %v671, 1.442695
        %v696 = vpow.pop %v695
        %v697 = vmul.f32 %v672, 1.442695
        %v698 = vpow.pop %v697
        %v699 = vmul.f32 %v673, 1.442695
        %v700 = vpow.pop %v699
        %v701 = vmul.f32 %v674, 1.442695
        %v702 = vpow.pop %v701
        %v703 = vmul.f32 %v675, 1.442695
        %v704 = vpow.pop %v703
        %v705 = vmul.f32 %v676, 1.442695
        %v706 = vpow.pop %v705
        %v707 = vmul.f32 %v677, 1.442695
        %v708 = vpow.pop %v707
        %v709 = vmul.f32 %v678, 1.442695
        %v710 = vpow.pop %v709
        %v711 = vadd.f32 %v680, 2.0
        %v712 = vadd.f32 %v682, 2.0
        %v713 = vadd.f32 %v684, 2.0
        %v714 = vadd.f32 %v686, 2.0
        %v715 = vadd.f32 %v688, 2.0
        %v716 = vadd.f32 %v690, 2.0
        %v717 = vadd.f32 %v692, 2.0
        %v718 = vadd.f32 %v694, 2.0
        %v719 = vadd.f32 %v696, 2.0
        %v720 = vadd.f32 %v698, 2.0
        %v721 = vadd.f32 %v700, 2.0
        %v722 = vadd.f32 %v702, 2.0
        %v723 = vadd.f32 %v704, 2.0
        %v724 = vadd.f32 %v706, 2.0
        %v725 = vadd.f32 %v708, 2.0
        %v726 = vadd.f32 %v710, 2.0
        %v727 = vmul.f32 %v680, %v711
        %v728 = vmul.f32 %v682, %v712
        %v729 = vmul.f32 %v684, %v713
        %v730 = vmul.f32 %v686, %v714
        %v731 = vmul.f32 %v688, %v715
        %v732 = vmul.f32 %v690, %v716
        %v733 = vmul.f32 %v692, %v717
        %v734 = vmul.f32 %v694, %v718
        %v735 = vmul.f32 %v696, %v719
        %v736 = vmul.f32 %v698, %v720
        %v737 = vmul.f32 %v700, %v721
        %v738 = vmul.f32 %v702, %v722
        %v739 = vmul.f32 %v704, %v723
        %v740 = vmul.f32 %v706, %v724
        %v741 = vmul.f32 %v708, %v725
        %v742 = vmul.f32 %v710, %v726
        %v743 = vadd.f32 %v727, 2.0
        %v744 = vadd.f32 %v728, 2.0
        %v745 = vadd.f32 %v729, 2.0
        %v746 = vadd.f32 %v730, 2.0
        %v747 = vadd.f32 %v731, 2.0
        %v748 = vadd.f32 %v732, 2.0
        %v749 = vadd.f32 %v733, 2.0
        %v750 = vadd.f32 %v734, 2.0
        %v751 = vadd.f32 %v735, 2.0
        %v752 = vadd.f32 %v736, 2.0
        %v753 = vadd.f32 %v737, 2.0
        %v754 = vadd.f32 %v738, 2.0
        %v755 = vadd.f32 %v739, 2.0
        %v756 = vadd.f32 %v740, 2.0
        %v757 = vadd.f32 %v741, 2.0
        %v758 = vadd.f32 %v742, 2.0
        %v759 = vrcp.pop %v743
        %v760 = vrcp.pop %v744
        %v761 = vrcp.pop %v745
        %v762 = vrcp.pop %v746
        %v763 = vrcp.pop %v747
        %v764 = vrcp.pop %v748
        %v765 = vrcp.pop %v749
        %v766 = vrcp.pop %v750
        %v767 = vrcp.pop %v751
        %v768 = vrcp.pop %v752
        %v769 = vrcp.pop %v753
        %v770 = vrcp.pop %v754
        %v771 = vrcp.pop %v755
        %v772 = vrcp.pop %v756
        %v773 = vrcp.pop %v757
        %v774 = vrcp.pop %v758
        %v775 = vmul.f32 %v727, %v759
        %v776 = vmul.f32 %v728, %v760
        %v777 = vmul.f32 %v729, %v761
        %v778 = vmul.f32 %v730, %v762
        %v779 = vmul.f32 %v731, %v763
        %v780 = vmul.f32 %v732, %v764
        %v781 = vmul.f32 %v733, %v765
        %v782 = vmul.f32 %v734, %v766
        %v783 = vmul.f32 %v735, %v767
        %v784 = vmul.f32 %v736, %v768
        %v785 = vmul.f32 %v737, %v769
        %v786 = vmul.f32 %v738, %v770
        %v787 = vmul.f32 %v739, %v771
        %v788 = vmul.f32 %v740, %v772
        %v789 = vmul.f32 %v741, %v773
        %v790 = vmul.f32 %v742, %v774
        %v791 = vmul.f32 %v552, %v775
        %v792 = vmul.f32 %v554, %v776
        %v793 = vmul.f32 %v641, %v777
        %v794 = vmul.f32 %v643, %v778
        %v795 = vmul.f32 %v558, %v779
        %v796 = vmul.f32 %v560, %v780
        %v797 = vmul.f32 %v647, %v781
        %v798 = vmul.f32 %v649, %v782
        %v799 = vmul.f32 %v564, %v783
        %v800 = vmul.f32 %v566, %v784
        %v801 = vmul.f32 %v653, %v785
        %v802 = vmul.f32 %v655, %v786
        %v803 = vmul.f32 %v570, %v787
        %v804 = vmul.f32 %v572, %v788
        %v805 = vmul.f32 %v659, %v789
        %v806 = vmul.f32 %v661, %v790
        %v807 = vld [vmem:[#allocation7] sm:$0xff]
        %v808 = vld [vmem:[#allocation7 + $0x8] sm:$0xff]
        %v809 = vld [vmem:[#allocation7 + $0x10] sm:$0xff]
        %v810 = vld [vmem:[#allocation7 + $0x18] sm:$0xff]
        %v811 = vld [vmem:[#allocation7 + $0x20] sm:$0xff]
        %v812 = vld [vmem:[#allocation7 + $0x28] sm:$0xff]
        %v813 = vld [vmem:[#allocation7 + $0x30] sm:$0xff]
        %v814 = vld [vmem:[#allocation7 + $0x38] sm:$0xff]
        %v815 = vld [vmem:[#allocation7 + $0x40] sm:$0xff]
        %v816 = vld [vmem:[#allocation7 + $0x48] sm:$0xff]
        %v817 = vld [vmem:[#allocation7 + $0x50] sm:$0xff]
        %v818 = vld [vmem:[#allocation7 + $0x58] sm:$0xff]
        %v819 = vld [vmem:[#allocation7 + $0x60] sm:$0xff]
        %v820 = vld [vmem:[#allocation7 + $0x68] sm:$0xff]
        %v821 = vld [vmem:[#allocation7 + $0x70] sm:$0xff]
        %v822 = vld [vmem:[#allocation7 + $0x78] sm:$0xff]
        %v823 = vld [vmem:[#allocation7 + $0x80] sm:$0xff]
        %v824 = vld [vmem:[#allocation7 + $0x88] sm:$0xff]
        %v825 = vld [vmem:[#allocation7 + $0x90] sm:$0xff]
        %v826 = vld [vmem:[#allocation7 + $0x98] sm:$0xff]
        %v827 = vld [vmem:[#allocation7 + $0xa0] sm:$0xff]
        %v828 = vld [vmem:[#allocation7 + $0xa8] sm:$0xff]
        %v829 = vld [vmem:[#allocation7 + $0xb0] sm:$0xff]
        %v830 = vld [vmem:[#allocation7 + $0xb8] sm:$0xff]
        %v831 = vld [vmem:[#allocation7 + $0xc0] sm:$0xff]
        %v832 = vld [vmem:[#allocation7 + $0xc8] sm:$0xff]
        %v833 = vld [vmem:[#allocation7 + $0xd0] sm:$0xff]
        %v834 = vld [vmem:[#allocation7 + $0xd8] sm:$0xff]
        %v835 = vld [vmem:[#allocation7 + $0xe0] sm:$0xff]
        %v836 = vld [vmem:[#allocation7 + $0xe8] sm:$0xff]
        %v837 = vld [vmem:[#allocation7 + $0xf0] sm:$0xff]
        %v838 = vld [vmem:[#allocation7 + $0xf8] sm:$0xff]
        %v839 = vld [vmem:[#allocation7 + $0x100] sm:$0xff]
        %v840 = vld [vmem:[#allocation7 + $0x108] sm:$0xff]
        %v841 = vld [vmem:[#allocation7 + $0x110] sm:$0xff]
        %v842 = vld [vmem:[#allocation7 + $0x118] sm:$0xff]
        %v843 = vld [vmem:[#allocation7 + $0x120] sm:$0xff]
        %v844 = vld [vmem:[#allocation7 + $0x128] sm:$0xff]
        %v845 = vld [vmem:[#allocation7 + $0x130] sm:$0xff]
        %v846 = vld [vmem:[#allocation7 + $0x138] sm:$0xff]
        %v847 = vld [vmem:[#allocation7 + $0x140] sm:$0xff]
        %v848 = vld [vmem:[#allocation7 + $0x148] sm:$0xff]
        %v849 = vld [vmem:[#allocation7 + $0x150] sm:$0xff]
        %v850 = vld [vmem:[#allocation7 + $0x158] sm:$0xff]
        %v851 = vld [vmem:[#allocation7 + $0x160] sm:$0xff]
        %v852 = vld [vmem:[#allocation7 + $0x168] sm:$0xff]
        %v853 = vld [vmem:[#allocation7 + $0x170] sm:$0xff]
        %v854 = vld [vmem:[#allocation7 + $0x178] sm:$0xff]
        %v855 = vld [vmem:[#allocation7 + $0x180] sm:$0xff]
        %v856 = vld [vmem:[#allocation7 + $0x188] sm:$0xff]
        %v857 = vld [vmem:[#allocation7 + $0x190] sm:$0xff]
        %v858 = vld [vmem:[#allocation7 + $0x198] sm:$0xff]
        %v859 = vld [vmem:[#allocation7 + $0x1a0] sm:$0xff]
        %v860 = vld [vmem:[#allocation7 + $0x1a8] sm:$0xff]
        %v861 = vld [vmem:[#allocation7 + $0x1b0] sm:$0xff]
        %v862 = vld [vmem:[#allocation7 + $0x1b8] sm:$0xff]
        %v863 = vld [vmem:[#allocation7 + $0x1c0] sm:$0xff]
        %v864 = vld [vmem:[#allocation7 + $0x1c8] sm:$0xff]
        %v865 = vld [vmem:[#allocation7 + $0x1d0] sm:$0xff]
        %v866 = vld [vmem:[#allocation7 + $0x1d8] sm:$0xff]
        %v867 = vld [vmem:[#allocation7 + $0x1e0] sm:$0xff]
        %v868 = vld [vmem:[#allocation7 + $0x1e8] sm:$0xff]
        %v869 = vld [vmem:[#allocation7 + $0x1f0] sm:$0xff]
        %v870 = vld [vmem:[#allocation7 + $0x1f8] sm:$0xff]
        %871 = vmatprep.subr.mxu0 0.0
        %872 = vmatpush1.msra.mxu0 %v822
        %873 = vmatprep.subr.mxu0 0.0
        %874 = vmatpush1.msra.mxu0 %v821
        %875 = vmatprep.subr.mxu0 0.0
        %876 = vmatpush1.msra.mxu0 %v820
        %877 = vmatprep.subr.mxu0 0.0
        %878 = vmatpush1.msra.mxu0 %v819
        %879 = vmatprep.subr.mxu0 0.0
        %880 = vmatpush1.msra.mxu0 %v818
        %881 = vmatprep.subr.mxu0 0.0
        %882 = vmatpush1.msra.mxu0 %v817
        %883 = vmatprep.subr.mxu0 0.0
        %884 = vmatpush1.msra.mxu0 %v816
        %885 = vmatprep.subr.mxu0 0.0
        %886 = vmatpush1.msra.mxu0 %v815
        %887 = vmatprep.subr.mxu0 0.0
        %888 = vmatpush1.msra.mxu0 %v814
        %889 = vmatprep.subr.mxu0 0.0
        %890 = vmatpush1.msra.mxu0 %v813
        %891 = vmatprep.subr.mxu0 0.0
        %892 = vmatpush1.msra.mxu0 %v812
        %893 = vmatprep.subr.mxu0 0.0
        %894 = vmatpush1.msra.mxu0 %v811
        %895 = vmatprep.subr.mxu0 0.0
        %896 = vmatpush1.msra.mxu0 %v810
        %897 = vmatprep.subr.mxu0 0.0
        %898 = vmatpush1.msra.mxu0 %v809
        %899 = vmatprep.subr.mxu0 0.0
        %900 = vmatpush1.msra.mxu0 %v808
        %901 = vmatprep.subr.mxu0 0.0
        %902 = vmatpush1.msra.mxu0 %v807
        %903 = vmatprep.subr.mxu0 0.0
        %904 = vmatpush2.msra.mxu0 %v838
        %905 = vmatprep.subr.mxu0 0.0
        %906 = vmatpush2.msra.mxu0 %v837
        %907 = vmatprep.subr.mxu0 0.0
        %908 = vmatpush2.msra.mxu0 %v836
        %909 = vmatprep.subr.mxu0 0.0
        %910 = vmatpush2.msra.mxu0 %v835
        %911 = vmatprep.subr.mxu0 0.0
        %912 = vmatpush2.msra.mxu0 %v834
        %913 = vmatprep.subr.mxu0 0.0
        %914 = vmatpush2.msra.mxu0 %v833
        %915 = vmatprep.subr.mxu0 0.0
        %916 = vmatpush2.msra.mxu0 %v832
        %917 = vmatprep.subr.mxu0 0.0
        %918 = vmatpush2.msra.mxu0 %v831
        %919 = vmatprep.subr.mxu0 0.0
        %920 = vmatpush2.msra.mxu0 %v830
        %921 = vmatprep.subr.mxu0 0.0
        %922 = vmatpush2.msra.mxu0 %v829
        %923 = vmatprep.subr.mxu0 0.0
        %924 = vmatpush2.msra.mxu0 %v828
        %925 = vmatprep.subr.mxu0 0.0
        %926 = vmatpush2.msra.mxu0 %v827
        %927 = vmatprep.subr.mxu0 0.0
        %928 = vmatpush2.msra.mxu0 %v826
        %929 = vmatprep.subr.mxu0 0.0
        %930 = vmatpush2.msra.mxu0 %v825
        %931 = vmatprep.subr.mxu0 0.0
        %932 = vmatpush2.msra.mxu0 %v824
        %933 = vmatprep.subr.mxu0 0.0
        %934 = vmatpush2.msra.mxu0 %v823
        %935 = vmatprep.mubr.f32.mxu0 %v792
        %936 = vmatmul.mubr.f32.gmra.mxu0 %v791
        %v937 = vpop.f32.mrf.mxu0
        %v938 = vadd.f32 0.0, %v937
        %v939 = vpop.f32.mrf.mxu0
        %940 = vmatprep.mubr.f32.mxu0 %v796
        %941 = vmatmul.mubr.f32.gmra.mxu0 %v795
        %v942 = vpop.f32.mrf.mxu0
        %v943 = vadd.f32 0.0, %v942
        %v944 = vpop.f32.mrf.mxu0
        %945 = vmatprep.mubr.f32.mxu0 %v800
        %946 = vmatmul.mubr.f32.gmra.mxu0 %v799
        %v947 = vpop.f32.mrf.mxu0
        %v948 = vadd.f32 0.0, %v947
        %v949 = vpop.f32.mrf.mxu0
        %950 = vmatprep.mubr.f32.mxu0 %v804
        %951 = vmatmul.mubr.f32.gmra.mxu0 %v803
        %v952 = vpop.f32.mrf.mxu0
        %v953 = vadd.f32 0.0, %v952
        %v954 = vpop.f32.mrf.mxu0
        %955 = vdwg.mxu0
        %956 = vmatprep.subr.mxu0 0.0
        %957 = vmatpush1.msra.mxu0 %v854
        %958 = vmatprep.subr.mxu0 0.0
        %959 = vmatpush1.msra.mxu0 %v853
        %960 = vmatprep.subr.mxu0 0.0
        %961 = vmatpush1.msra.mxu0 %v852
        %962 = vmatprep.subr.mxu0 0.0
        %963 = vmatpush1.msra.mxu0 %v851
        %964 = vmatprep.subr.mxu0 0.0
        %965 = vmatpush1.msra.mxu0 %v850
        %966 = vmatprep.subr.mxu0 0.0
        %967 = vmatpush1.msra.mxu0 %v849
        %968 = vmatprep.subr.mxu0 0.0
        %969 = vmatpush1.msra.mxu0 %v848
        %970 = vmatprep.subr.mxu0 0.0
        %971 = vmatpush1.msra.mxu0 %v847
        %972 = vmatprep.subr.mxu0 0.0
        %973 = vmatpush1.msra.mxu0 %v846
        %974 = vmatprep.subr.mxu0 0.0
        %975 = vmatpush1.msra.mxu0 %v845
        %976 = vmatprep.subr.mxu0 0.0
        %977 = vmatpush1.msra.mxu0 %v844
        %978 = vmatprep.subr.mxu0 0.0
        %979 = vmatpush1.msra.mxu0 %v843
        %980 = vmatprep.subr.mxu0 0.0
        %981 = vmatpush1.msra.mxu0 %v842
        %982 = vmatprep.subr.mxu0 0.0
        %983 = vmatpush1.msra.mxu0 %v841
        %984 = vmatprep.subr.mxu0 0.0
        %985 = vmatpush1.msra.mxu0 %v840
        %986 = vmatprep.subr.mxu0 0.0
        %987 = vmatpush1.msra.mxu0 %v839
        %988 = vmatprep.subr.mxu0 0.0
        %989 = vmatpush2.msra.mxu0 %v870
        %990 = vmatprep.subr.mxu0 0.0
        %991 = vmatpush2.msra.mxu0 %v869
        %992 = vmatprep.subr.mxu0 0.0
        %993 = vmatpush2.msra.mxu0 %v868
        %994 = vmatprep.subr.mxu0 0.0
        %995 = vmatpush2.msra.mxu0 %v867
        %996 = vmatprep.subr.mxu0 0.0
        %997 = vmatpush2.msra.mxu0 %v866
        %998 = vmatprep.subr.mxu0 0.0
        %999 = vmatpush2.msra.mxu0 %v865
        %1000 = vmatprep.subr.mxu0 0.0
        %1001 = vmatpush2.msra.mxu0 %v864
        %1002 = vmatprep.subr.mxu0 0.0
        %1003 = vmatpush2.msra.mxu0 %v863
        %1004 = vmatprep.subr.mxu0 0.0
        %1005 = vmatpush2.msra.mxu0 %v862
        %1006 = vmatprep.subr.mxu0 0.0
        %1007 = vmatpush2.msra.mxu0 %v861
        %1008 = vmatprep.subr.mxu0 0.0
        %1009 = vmatpush2.msra.mxu0 %v860
        %1010 = vmatprep.subr.mxu0 0.0
        %1011 = vmatpush2.msra.mxu0 %v859
        %1012 = vmatprep.subr.mxu0 0.0
        %1013 = vmatpush2.msra.mxu0 %v858
        %1014 = vmatprep.subr.mxu0 0.0
        %1015 = vmatpush2.msra.mxu0 %v857
        %1016 = vmatprep.subr.mxu0 0.0
        %1017 = vmatpush2.msra.mxu0 %v856
        %1018 = vmatprep.subr.mxu0 0.0
        %1019 = vmatpush2.msra.mxu0 %v855
        %1020 = vmatprep.mubr.f32.mxu0 %v794
        %1021 = vmatmul.mubr.f32.gmra.mxu0 %v793
        %v1022 = vpop.f32.mrf.mxu0
        %v1023 = vadd.f32 %v938, %v1022
        %v1024 = vpop.f32.mrf.mxu0
        %1025 = vmatprep.mubr.f32.mxu0 %v798
        %1026 = vmatmul.mubr.f32.gmra.mxu0 %v797
        %v1027 = vpop.f32.mrf.mxu0
        %v1028 = vadd.f32 %v943, %v1027
        %v1029 = vpop.f32.mrf.mxu0
        %1030 = vmatprep.mubr.f32.mxu0 %v802
        %1031 = vmatmul.mubr.f32.gmra.mxu0 %v801
        %v1032 = vpop.f32.mrf.mxu0
        %v1033 = vadd.f32 %v948, %v1032
        %v1034 = vpop.f32.mrf.mxu0
        %1035 = vmatprep.mubr.f32.mxu0 %v806
        %1036 = vmatmul.mubr.f32.gmra.mxu0 %v805
        %v1037 = vpop.f32.mrf.mxu0
        %v1038 = vadd.f32 %v953, %v1037
        %v1039 = vpop.f32.mrf.mxu0
        %1040 = vdwg.mxu0
        %v1041 = vadd.f32 %v328, %v1023
        %v1042 = vadd.f32 %v329, %v1028
        %v1043 = vadd.f32 %v330, %v1033
        %v1044 = vadd.f32 %v331, %v1038
        %v1045 = vld [vmem:[%s6] sm:$0x1]
        %v1047 = vlaneseq
        %v1048 = vshrl.u32 %v1047, 7
        %v1049 = vsub.s32 0, %v1048
        %v1050 = vrot.slane %v1045, %v1049
        %v1052 = vadd.f32 %v1041, %v1050
        %v1053 = vadd.f32 %v1042, %v1050
        %v1054 = vadd.f32 %v1043, %v1050
        %v1055 = vadd.f32 %v1044, %v1050
        %1056 = vst [vmem:[%s325] sm:$0xff] %v1052
        %1057 = vst [vmem:[%s325 + $0x8] sm:$0xff] %v1053
        %1058 = vst [vmem:[%s325 + $0x10] sm:$0xff] %v1054
        %1059 = vst [vmem:[%s325 + $0x18] sm:$0xff] %v1055
        %s1060 = sand.u32 %s185, 1
        %s1061 = scalar_lea.sflag [#allocation4], %s1060
        %s1062 = sand.u32 %s185, 1
        %s1063 = smul.addr %s1062, 32
        %s1064 = scalar_lea.vmem [#allocation8], %s1063
        // Predicated region
        $region61: #{tpu_custom_call.1} parent=47 // pred_check
          %p1065 = pneg %p195
        $region62: #{tpu_custom_call.1} parent=47 // pred_check_branch
          %1067 = sbr.rel (%p1065) target = $region64
        $region63: #{tpu_custom_call.1} parent=47 // pred_region
          %s1068 = smul.u32 4, %s25
          %s1070 = ssub.s32 512, 512
          %1071 = vsyncadd %s1061, %s1070
          %s1072 = smul.addr %s1068, 128
          %s1073 = scalar_lea.hbm %s7, %s1072
          %s1074 = sshll.u32 %s1064, 4
          %s1075 = int_to_ptr.vmem [resolvable:$true] %s1074
          %1080 = dma.vmem_to_hbm [thread:$0]  %s1075, 512, %s1073, %s1061, 128, 128, 8
        $region64: #{tpu_custom_call.1} parent=47 // pred_fallthru
          _
      $region48: #{tpu_custom_call.1} parent=5 // pred_fallthru
        _
      %p1081 = scmp.le.s32.totalorder 2, %s20
      // Predicated region
      $region65: #{tpu_custom_call.1} parent=5 // pred_check
        %p1082 = pneg %p1081
      $region66: #{tpu_custom_call.1} parent=5 // pred_check_branch
        %1084 = sbr.rel (%p1082) target = $region68
      $region67: #{tpu_custom_call.1} parent=5 // pred_region
        %s1085 = ssub.s32 %s20, 2
        // Predicated region
        $region69: #{tpu_custom_call.1} parent=67 // pred_check
          %p1086 = pneg %p201
        $region70: #{tpu_custom_call.1} parent=67 // pred_check_branch
          %1088 = sbr.rel (%p1086) target = $region72
        $region71: #{tpu_custom_call.1} parent=67 // pred_region
          %s1089 = sand.u32 %s186, 1
          %s1090 = scalar_lea.sflag [#allocation4], %s1089
          %s1091 = sand.u32 %s186, 1
          %s1092 = smul.addr %s1091, 32
          %s1093 = scalar_lea.vmem [#allocation8], %s1092
          %1094 = dma.done %s1090, 512
        $region72: #{tpu_custom_call.1} parent=67 // pred_fallthru
          _
      $region68: #{tpu_custom_call.1} parent=5 // pred_fallthru
        _
    $region6: #{tpu_custom_call.1} parent=1 // loop_footer
      %s24 = sadd.s32 1, %s20
    $region7: #{tpu_custom_call.1} parent=1 // loop_footer_branch
      %19 = sbr.rel target = $region3
    $region8: #{tpu_custom_call.1} parent=1 // loop_exit
      _
    %1095 = vsyncpa [#allocation3], 1
    %s1096 = scalar_lea.sflag [#allocation3], 1
    %1097 = vsyncpa %s1096, 1
    %1098 = vsyncpa [#allocation6], 1
    %1099 = vsyncpa [#allocation4], 1
    %s1100 = scalar_lea.sflag [#allocation4], 1
    %1101 = vsyncpa %s1100, 1

</llo_original>
